<compile_context>
chip_gen: v5e
topology: v5e:2x2
jax: 0.10.0
libtpu: 0.0.40
codegen_flags: <defaults>
</compile_context>

<pallas_src>
import jax
import jax.numpy as jnp
from jax import lax
from jax.experimental import pallas as pl
from jax.experimental.pallas import tpu as pltpu


_N_STATS = 6  # [sq*mask_pred, cnt_pred, sq*mask_gt, cnt_gt, ce_sum, sq_first4]


def _make_kernel(n_class, tile_rows, n_s_per, valid_rows, needs_pad):
    C, TR = n_class, tile_rows

    def kernel(pred_ref, label_ref, recon_ref, gt_ref, stats_ref):
        c = pl.program_id(0)   # core-slice (spatial split across TensorCores)
        i = pl.program_id(1)   # batch element
        s = pl.program_id(2)   # spatial row-tile within this core-slice
        first = jnp.logical_and(i == 0, s == 0)   # first step of THIS core-slice

        @pl.when(first)
        def _init():
            stats_ref[...] = jnp.zeros_like(stats_ref)

        recon = recon_ref[0].astype(jnp.float32)          # (TR, 128)
        gt = gt_ref[0].astype(jnp.float32)
        diff = recon - gt
        sq = diff * diff

        lab = label_ref[0]
        if jnp.issubdtype(lab.dtype, jnp.integer):
            label_i = lab.astype(jnp.int32)
            gt_fg = label_i > 0
        else:
            # torch `.type(LongTensor)` truncates; matched here.
            label_f = lab.astype(jnp.float32)
            label_i = label_f.astype(jnp.int32)
            gt_fg = label_f > 0.5

        # Per-class logits (cast after load; native dtype streamed from HBM).
        p = [pred_ref[0, cc].astype(jnp.float32) for cc in range(C)]

        # mask_pred == (argmax_c pred > 0); strict > keeps first-occurrence ties.
        m_rest = p[1]
        for cc in range(2, C):
            m_rest = jnp.maximum(m_rest, p[cc])
        pred_fg = m_rest > p[0]

        # Cross entropy: logsumexp(pred) - pred[label]; unrolled over C (no onehot).
        m_all = jnp.maximum(p[0], m_rest)
        sum_exp = jnp.exp(p[0] - m_all)
        picked = jnp.where(label_i == 0, p[0], 0.0)
        for cc in range(1, C):
            sum_exp = sum_exp + jnp.exp(p[cc] - m_all)
            picked = picked + jnp.where(label_i == cc, p[cc], 0.0)
        ce = m_all + jnp.log(sum_exp) - picked            # (TR, 128)

        rows = lax.broadcasted_iota(jnp.int32, (TR, 128), 0)
        if needs_pad:
            # Pad rows carry all-zero logits + label 0 -> would each add log(C).
            tile_start = (c * n_s_per + s) * TR
            ce = jnp.where((tile_start + rows) < valid_rows, ce, 0.0)

        def fold(x):   # (TR,128) -> (8,128) via pure cross-vreg VPU adds
            return x.reshape(TR // 8, 8, 128).sum(axis=0)

        stats_ref[0, 0] += fold(jnp.where(pred_fg, sq, 0.0))
        stats_ref[0, 1] += fold(jnp.where(pred_fg, 1.0, 0.0))
        stats_ref[0, 2] += fold(jnp.where(gt_fg, sq, 0.0))
        stats_ref[0, 3] += fold(jnp.where(gt_fg, 1.0, 0.0))
        stats_ref[0, 4] += fold(ce)

        # Degenerate fallback: squared error at flat positions 0..3 of batch 0
        # (positions PyTorch forces to classes 1..4 when sum(argmax) < 1).
        # Computed exactly once: core-slice 0, batch 0, first spatial tile.
        @pl.when(jnp.logical_and(first, c == 0))
        def _fallback():
            lanes = lax.broadcasted_iota(jnp.int32, (TR, 128), 1)
            fb = jnp.logical_and(rows == 0, lanes < 4)
            stats_ref[0, 5] += fold(jnp.where(fb, sq, 0.0))

    return kernel


def _vmem_budget_bytes():
    """Generation-aware VMEM budget for per-step tiles + matching compiler limit."""
    cap = None
    try:
        cap = int(getattr(pltpu.get_tpu_info(), "vmem_capacity_bytes", 0)) or None
    except Exception:
        cap = None
    if cap is None:
        cap = 64 << 20                       # assume the smallest (v7x-like)
    budget = (20 << 20) if cap <= (64 << 20) else (40 << 20)
    limit = min(cap, budget + (12 << 20))
    return budget, limit


def _choose_tile_rows(rows, in_bytes_per_row, temp_bytes_per_row, num_splits,
                      budget_bytes):
    """Largest multiple-of-8 row tile whose per-step VMEM footprint fits.

    Footprint per row: 2x (double-buffered) input blocks + in-body f32 temporaries.
    Capped to the 512-2048 row operating point; never exceeds one core's work."""
    per_row = 2 * in_bytes_per_row + temp_bytes_per_row
    tr = int(budget_bytes // per_row) // 8 * 8
    tr = max(8, min(tr, 2048))
    rows_per_core = -(-rows // num_splits)
    tr = min(tr, -(-rows_per_core // 8) * 8)
    return tr


def recon_loss(img_recon, img_gt, pred_seg0, label_gt, mr_flag,
               tile_rows=None, num_splits=2):
    """img_recon/img_gt/label_gt: (N,1,D,H,W);  pred_seg0: (N,C,D,H,W);  mr_flag: bool."""
    N, C = int(pred_seg0.shape[0]), int(pred_seg0.shape[1])
    S = int(pred_seg0.shape[2] * pred_seg0.shape[3] * pred_seg0.shape[4])
    assert C >= 2, "need at least 2 classes"
    assert S % 128 == 0, "D*H*W must be a multiple of 128 (lane packing)"
    R = S // 128
    num_splits = max(1, int(num_splits))

    def itemsize(x):
        return jnp.dtype(x.dtype).itemsize

    budget, vmem_limit = _vmem_budget_bytes()
    if tile_rows is None:
        in_bytes_per_row = 128 * (C * itemsize(pred_seg0) + itemsize(img_recon)
                                  + itemsize(img_gt) + itemsize(label_gt))
        TR = _choose_tile_rows(R, in_bytes_per_row, (C + 6) * 128 * 4,
                               num_splits, budget)
    else:
        TR = int(tile_rows)
        assert TR > 0 and TR % 8 == 0, "tile_rows must be a positive multiple of 8"

    n_s_per = -(-R // (num_splits * TR))        # spatial tiles per core-slice
    R_pad = num_splits * n_s_per * TR
    needs_pad = R_pad != R

    # Lane-dense repack (rows, 128) in native dtype; zero-pad rows if needed.
    def repack(x, lead_shape):
        x = x.reshape(lead_shape + (R, 128))
        if needs_pad:
            pad = [(0, 0)] * len(lead_shape) + [(0, R_pad - R), (0, 0)]
            x = jnp.pad(x, pad)
        return x

    pred = repack(pred_seg0, (N, C))
    label = repack(label_gt, (N,))
    recon = repack(img_recon, (N,))
    gt = repack(img_gt, (N,))

    kernel = _make_kernel(C, TR, n_s_per, R, needs_pad)

    cost = pl.CostEstimate(
        flops=int((5 * C + 20) * N * S),
        transcendentals=int((C + 1) * N * S),
        bytes_accessed=int(N * S * (C * itemsize(pred_seg0) + itemsize(img_recon)
                                    + itemsize(img_gt) + itemsize(label_gt))
                           + num_splits * _N_STATS * 8 * 128 * 4),
    )

    # Note: label_gt can be passed as an integer dtype to cut streamed bytes on
    # v5e (int32 exercised below).
    # TODO(synk): validate int8 label streaming (sublane packing wants TR % 32 == 0)
    # on hardware before enabling it by default.
    partials = pl.pallas_call(
        kernel,
        out_shape=jax.ShapeDtypeStruct((num_splits, _N_STATS, 8, 128), jnp.float32),
        grid_spec=pltpu.PrefetchScalarGridSpec(
            num_scalar_prefetch=0,
            grid=(num_splits, N, n_s_per),
            in_specs=[
                pl.BlockSpec((1, C, TR, 128),
                             lambda c, i, s: (i, 0, c * n_s_per + s, 0)),
                pl.BlockSpec((1, TR, 128), lambda c, i, s: (i, c * n_s_per + s, 0)),
                pl.BlockSpec((1, TR, 128), lambda c, i, s: (i, c * n_s_per + s, 0)),
                pl.BlockSpec((1, TR, 128), lambda c, i, s: (i, c * n_s_per + s, 0)),
            ],
            out_specs=pl.BlockSpec((1, _N_STATS, 8, 128),
                                   lambda c, i, s: (c, 0, 0, 0)),
        ),
        compiler_params=pltpu.CompilerParams(
            dimension_semantics=("parallel", "arbitrary", "arbitrary"),
            vmem_limit_bytes=int(vmem_limit)),
        cost_estimate=cost,
    )(pred, label, recon, gt)

    stats = jnp.sum(partials, axis=(0, 2, 3))         # (_N_STATS,)
    sq_pred, cnt_pred, sq_gt, cnt_gt, ce_sum, sq_first4 = (
        stats[k] for k in range(_N_STATS))

    loss_seg = ce_sum / jnp.float32(N * S)             # CrossEntropyLoss(mean)

    if mr_flag:
        # MSE over label_gt > 0.5 selection (NaN if empty, same as the reference).
        loss_rec = sq_gt / cnt_gt
        loss = loss_rec + loss_seg
    else:
        # sum(argmax) < 1  <=>  cnt_pred == 0; keep unselected branch NaN-free.
        safe_cnt = jnp.maximum(cnt_pred, 1.0)
        loss_rec = jnp.where(cnt_pred < 0.5, sq_first4 / 4.0, sq_pred / safe_cnt)
        loss = loss_rec
    return loss_rec, loss_seg, loss


def recon_loss_ref(img_recon, img_gt, pred_seg0, label_gt, mr_flag):
    """Pure-JAX reference for validation."""
    N = pred_seg0.shape[0]
    logits = pred_seg0.astype(jnp.float32)
    label = label_gt.astype(jnp.int32)[:, 0]                       # (N,D,H,W)
    logp = jax.nn.log_softmax(logits, axis=1)
    picked = jnp.take_along_axis(logp, label[:, None], axis=1)[:, 0]
    loss_seg = -jnp.mean(picked)
    sq = (img_recon.astype(jnp.float32) - img_gt.astype(jnp.float32)) ** 2
    if mr_flag:
        mask = label_gt > 0.5
        loss_rec = jnp.sum(jnp.where(mask, sq, 0.0)) / jnp.sum(
            mask.astype(jnp.float32))
        loss = loss_rec + loss_seg
    else:
        label_pred = jnp.argmax(logits, axis=1)[:, None]           # (N,1,D,H,W)
        mask = label_pred > 0
        normal = jnp.sum(jnp.where(mask, sq, 0.0)) / jnp.maximum(
            jnp.sum(mask.astype(jnp.float32)), 1.0)
        fallback = jnp.mean(sq.reshape(N, -1)[0, :4])
        loss_rec = jnp.where(jnp.sum(label_pred) < 1, fallback, normal)
        loss = loss_rec
    return loss_rec, loss_seg, loss


if __name__ == "__main__":
    key = jax.random.PRNGKey(0)

    def make_inputs(key, N, C, D, H, W, dtype, label_dtype):
        k1, k2, k3, k4 = jax.random.split(key, 4)
        img_recon = jax.random.normal(k1, (N, 1, D, H, W), jnp.float32).astype(dtype)
        img_gt = jax.random.normal(k2, (N, 1, D, H, W), jnp.float32).astype(dtype)
        pred_seg0 = jax.random.normal(k3, (N, C, D, H, W), jnp.float32).astype(dtype)
        label_gt = jax.random.randint(k4, (N, 1, D, H, W), 0, C).astype(label_dtype)
        return img_recon, img_gt, pred_seg0, label_gt

    cases = [
        # (N, C, D, H, W), img/pred dtype, label dtype, explicit tile_rows
        ((2, 4, 4, 4, 8), jnp.float32, jnp.float32, None),    # S=128,  R=1 (padded)
        ((2, 4, 8, 8, 32), jnp.float32, jnp.float32, 8),      # S=2048, R=16
        ((2, 4, 8, 8, 32), jnp.bfloat16, jnp.bfloat16, None), # native-dtype stream
        ((2, 5, 4, 8, 8), jnp.float32, jnp.int32, None),      # int labels, odd C
    ]
    for (N, C, D, H, W), dtype, label_dtype, tr in cases:
        inputs = make_inputs(key, N, C, D, H, W, dtype, label_dtype)
        for mr_flag in (True, False):
            out = recon_loss(*inputs, mr_flag, tile_rows=tr)
            out = jax.block_until_ready(out)
            ref = recon_loss_ref(*inputs, mr_flag)
            for a, b in zip(out, ref):
                assert jnp.allclose(a, b, atol=1e-3, rtol=1e-3), (
                    (N, C, D, H, W), str(dtype), str(label_dtype), mr_flag, a, b)

    print("KERNEL_OK")
</pallas_src>

<mosaic_0001>
module attributes {stable_mosaic.version = 11 : i64} {
  func.func @kernel(%arg0: i32, %arg1: i32, %arg2: i32, %arg3: memref<1x4x8x128xf32, #tpu.memory_space<vmem>>, %arg4: memref<1x8x128xf32, #tpu.memory_space<vmem>>, %arg5: memref<1x8x128xf32, #tpu.memory_space<vmem>>, %arg6: memref<1x8x128xf32, #tpu.memory_space<vmem>>, %arg7: memref<1x6x8x128xf32, #tpu.memory_space<vmem>>) attributes {dimension_semantics = [#tpu.dimension_semantics<parallel>, #tpu.dimension_semantics<arbitrary>, #tpu.dimension_semantics<arbitrary>], iteration_bounds = array<i64: 2, 2, 1>, scalar_prefetch = 0 : i64, scratch_operands = 0 : i64, tpu.core_type = #tpu.core_type<tc>, window_params = [{transform_indices = @transform_0, window_bounds = array<i64: 1, 4, 8, 128>}, {transform_indices = @transform_1, window_bounds = array<i64: 1, 8, 128>}, {transform_indices = @transform_2, window_bounds = array<i64: 1, 8, 128>}, {transform_indices = @transform_3, window_bounds = array<i64: 1, 8, 128>}, {transform_indices = @transform_4, window_bounds = array<i64: 1, 6, 8, 128>}]} {
    %c0_i32 = arith.constant 0 : i32
    %0 = arith.cmpi eq, %arg1, %c0_i32 : i32
    %c0_i32_0 = arith.constant 0 : i32
    %1 = arith.cmpi eq, %arg2, %c0_i32_0 : i32
    %2 = arith.andi %0, %1 : i1
    %3 = arith.extui %2 : i1 to i32
    %c0_i32_1 = arith.constant 0 : i32
    %4 = arith.cmpi ne, %3, %c0_i32_1 : i32
    scf.if %4 {
      %cst_83 = arith.constant 0.000000e+00 : f32
      %125 = vector.broadcast %cst_83 : f32 to vector<1x6x8x128xf32>
      %c0_84 = arith.constant 0 : index
      %c0_85 = arith.constant 0 : index
      %c0_86 = arith.constant 0 : index
      %c0_87 = arith.constant 0 : index
      %126 = vector.load %arg7[%c0_84, %c0_85, %c0_86, %c0_87] : memref<1x6x8x128xf32, #tpu.memory_space<vmem>>, vector<1x6x8x128xf32>
      tpu.vector_store %arg7[%c0_84, %c0_85, %c0_86, %c0_87], %125 {strides = array<i32>} : memref<1x6x8x128xf32, #tpu.memory_space<vmem>>, vector<1x6x8x128xf32>,
    } else {
    }
    %c0 = arith.constant 0 : index
    %c0_2 = arith.constant 0 : index
    %c0_3 = arith.constant 0 : index
    %5 = vector.load %arg5[%c0, %c0_2, %c0_3] : memref<1x8x128xf32, #tpu.memory_space<vmem>>, vector<1x8x128xf32>
    %6 = vector.shape_cast %5 : vector<1x8x128xf32> to vector<8x128xf32>
    %c0_4 = arith.constant 0 : index
    %c0_5 = arith.constant 0 : index
    %c0_6 = arith.constant 0 : index
    %7 = vector.load %arg6[%c0_4, %c0_5, %c0_6] : memref<1x8x128xf32, #tpu.memory_space<vmem>>, vector<1x8x128xf32>
    %8 = vector.shape_cast %7 : vector<1x8x128xf32> to vector<8x128xf32>
    %9 = arith.subf %6, %8 : vector<8x128xf32>
    %10 = arith.mulf %9, %9 : vector<8x128xf32>
    %c0_7 = arith.constant 0 : index
    %c0_8 = arith.constant 0 : index
    %c0_9 = arith.constant 0 : index
    %11 = vector.load %arg4[%c0_7, %c0_8, %c0_9] : memref<1x8x128xf32, #tpu.memory_space<vmem>>, vector<1x8x128xf32>
    %12 = vector.shape_cast %11 : vector<1x8x128xf32> to vector<8x128xf32>
    %13 = arith.fptosi %12 : vector<8x128xf32> to vector<8x128xi32>
    %cst = arith.constant 5.000000e-01 : f32
    %14 = vector.broadcast %cst : f32 to vector<8x128xf32>
    %15 = arith.cmpf ogt, %12, %14 : vector<8x128xf32>
    %c0_10 = arith.constant 0 : index
    %c0_11 = arith.constant 0 : index
    %c0_12 = arith.constant 0 : index
    %c0_13 = arith.constant 0 : index
    %16 = vector.load %arg3[%c0_10, %c0_11, %c0_12, %c0_13] : memref<1x4x8x128xf32, #tpu.memory_space<vmem>>, vector<1x1x8x128xf32>
    %17 = vector.shape_cast %16 : vector<1x1x8x128xf32> to vector<8x128xf32>
    %c0_14 = arith.constant 0 : index
    %c1 = arith.constant 1 : index
    %c0_15 = arith.constant 0 : index
    %c0_16 = arith.constant 0 : index
    %18 = vector.load %arg3[%c0_14, %c1, %c0_15, %c0_16] : memref<1x4x8x128xf32, #tpu.memory_space<vmem>>, vector<1x1x8x128xf32>
    %19 = vector.shape_cast %18 : vector<1x1x8x128xf32> to vector<8x128xf32>
    %c0_17 = arith.constant 0 : index
    %c2 = arith.constant 2 : index
    %c0_18 = arith.constant 0 : index
    %c0_19 = arith.constant 0 : index
    %20 = vector.load %arg3[%c0_17, %c2, %c0_18, %c0_19] : memref<1x4x8x128xf32, #tpu.memory_space<vmem>>, vector<1x1x8x128xf32>
    %21 = vector.shape_cast %20 : vector<1x1x8x128xf32> to vector<8x128xf32>
    %c0_20 = arith.constant 0 : index
    %c3 = arith.constant 3 : index
    %c0_21 = arith.constant 0 : index
    %c0_22 = arith.constant 0 : index
    %22 = vector.load %arg3[%c0_20, %c3, %c0_21, %c0_22] : memref<1x4x8x128xf32, #tpu.memory_space<vmem>>, vector<1x1x8x128xf32>
    %23 = vector.shape_cast %22 : vector<1x1x8x128xf32> to vector<8x128xf32>
    %24 = arith.maximumf %19, %21 : vector<8x128xf32>
    %25 = arith.maximumf %24, %23 : vector<8x128xf32>
    %26 = arith.cmpf ogt, %25, %17 : vector<8x128xf32>
    %27 = arith.maximumf %17, %25 : vector<8x128xf32>
    %28 = arith.subf %17, %27 : vector<8x128xf32>
    %29 = math.exp %28 : vector<8x128xf32>
    %c0_i32_23 = arith.constant 0 : i32
    %30 = vector.broadcast %c0_i32_23 : i32 to vector<8x128xi32>
    %31 = arith.cmpi eq, %13, %30 : vector<8x128xi32>
    %cst_24 = arith.constant 0.000000e+00 : f32
    %32 = vector.broadcast %cst_24 : f32 to vector<8x128xf32>
    %33 = arith.select %31, %17, %32 : vector<8x128xi1>, vector<8x128xf32>
    %34 = arith.subf %19, %27 : vector<8x128xf32>
    %35 = math.exp %34 : vector<8x128xf32>
    %36 = arith.addf %29, %35 : vector<8x128xf32>
    %c1_i32 = arith.constant 1 : i32
    %37 = vector.broadcast %c1_i32 : i32 to vector<8x128xi32>
    %38 = arith.cmpi eq, %13, %37 : vector<8x128xi32>
    %cst_25 = arith.constant 0.000000e+00 : f32
    %39 = vector.broadcast %cst_25 : f32 to vector<8x128xf32>
    %40 = arith.select %38, %19, %39 : vector<8x128xi1>, vector<8x128xf32>
    %41 = arith.addf %33, %40 : vector<8x128xf32>
    %42 = arith.subf %21, %27 : vector<8x128xf32>
    %43 = math.exp %42 : vector<8x128xf32>
    %44 = arith.addf %36, %43 : vector<8x128xf32>
    %c2_i32 = arith.constant 2 : i32
    %45 = vector.broadcast %c2_i32 : i32 to vector<8x128xi32>
    %46 = arith.cmpi eq, %13, %45 : vector<8x128xi32>
    %cst_26 = arith.constant 0.000000e+00 : f32
    %47 = vector.broadcast %cst_26 : f32 to vector<8x128xf32>
    %48 = arith.select %46, %21, %47 : vector<8x128xi1>, vector<8x128xf32>
    %49 = arith.addf %41, %48 : vector<8x128xf32>
    %50 = arith.subf %23, %27 : vector<8x128xf32>
    %51 = math.exp %50 : vector<8x128xf32>
    %52 = arith.addf %44, %51 : vector<8x128xf32>
    %c3_i32 = arith.constant 3 : i32
    %53 = vector.broadcast %c3_i32 : i32 to vector<8x128xi32>
    %54 = arith.cmpi eq, %13, %53 : vector<8x128xi32>
    %cst_27 = arith.constant 0.000000e+00 : f32
    %55 = vector.broadcast %cst_27 : f32 to vector<8x128xf32>
    %56 = arith.select %54, %23, %55 : vector<8x128xi1>, vector<8x128xf32>
    %57 = arith.addf %49, %56 : vector<8x128xf32>
    %58 = math.log %52 : vector<8x128xf32>
    %59 = arith.addf %27, %58 : vector<8x128xf32>
    %60 = arith.subf %59, %57 : vector<8x128xf32>
    %61 = tpu.iota {dimensions = array<i32: 0>} : vector<8x128xi32>
    %c1_i32_28 = arith.constant 1 : i32
    %62 = arith.muli %arg0, %c1_i32_28 : i32
    %63 = arith.addi %62, %arg2 : i32
    %c8_i32 = arith.constant 8 : i32
    %64 = arith.muli %63, %c8_i32 : i32
    %65 = vector.broadcast %64 : i32 to vector<8x128xi32>
    %66 = arith.addi %65, %61 : vector<8x128xi32>
    %c1_i32_29 = arith.constant 1 : i32
    %67 = vector.broadcast %c1_i32_29 : i32 to vector<8x128xi32>
    %68 = arith.cmpi slt, %66, %67 : vector<8x128xi32>
    %cst_30 = arith.constant 0.000000e+00 : f32
    %69 = vector.broadcast %cst_30 : f32 to vector<8x128xf32>
    %70 = arith.select %68, %60, %69 : vector<8x128xi1>, vector<8x128xf32>
    %c0_31 = arith.constant 0 : index
    %c0_32 = arith.constant 0 : index
    %c0_33 = arith.constant 0 : index
    %c0_34 = arith.constant 0 : index
    %71 = vector.load %arg7[%c0_31, %c0_32, %c0_33, %c0_34] : memref<1x6x8x128xf32, #tpu.memory_space<vmem>>, vector<1x1x8x128xf32>
    %72 = vector.shape_cast %71 : vector<1x1x8x128xf32> to vector<8x128xf32>
    %cst_35 = arith.constant 0.000000e+00 : f32
    %73 = vector.broadcast %cst_35 : f32 to vector<8x128xf32>
    %74 = arith.select %26, %10, %73 : vector<8x128xi1>, vector<8x128xf32>
    %75 = vector.shape_cast %74 : vector<8x128xf32> to vector<1x8x128xf32>
    %cst_36 = arith.constant dense<0.000000e+00> : vector<8x128xf32>
    %76 = vector.multi_reduction <add>, %75, %cst_36 [0] : vector<1x8x128xf32> to vector<8x128xf32>
    %77 = arith.addf %72, %76 : vector<8x128xf32>
    %c0_37 = arith.constant 0 : index
    %c0_38 = arith.constant 0 : index
    %c0_39 = arith.constant 0 : index
    %c0_40 = arith.constant 0 : index
    %78 = vector.load %arg7[%c0_37, %c0_38, %c0_39, %c0_40] : memref<1x6x8x128xf32, #tpu.memory_space<vmem>>, vector<1x1x8x128xf32>
    %79 = vector.shape_cast %78 : vector<1x1x8x128xf32> to vector<8x128xf32>
    %80 = vector.shape_cast %77 : vector<8x128xf32> to vector<1x1x8x128xf32>
    tpu.vector_store %arg7[%c0_37, %c0_38, %c0_39, %c0_40], %80 {strides = array<i32>} : memref<1x6x8x128xf32, #tpu.memory_space<vmem>>, vector<1x1x8x128xf32>,
    %c0_41 = arith.constant 0 : index
    %c1_42 = arith.constant 1 : index
    %c0_43 = arith.constant 0 : index
    %c0_44 = arith.constant 0 : index
    %81 = vector.load %arg7[%c0_41, %c1_42, %c0_43, %c0_44] : memref<1x6x8x128xf32, #tpu.memory_space<vmem>>, vector<1x1x8x128xf32>
    %82 = vector.shape_cast %81 : vector<1x1x8x128xf32> to vector<8x128xf32>
    %cst_45 = arith.constant 1.000000e+00 : f32
    %cst_46 = arith.constant 0.000000e+00 : f32
    %83 = vector.broadcast %cst_45 : f32 to vector<8x128xf32>
    %84 = vector.broadcast %cst_46 : f32 to vector<8x128xf32>
    %85 = arith.select %26, %83, %84 : vector<8x128xi1>, vector<8x128xf32>
    %86 = vector.shape_cast %85 : vector<8x128xf32> to vector<1x8x128xf32>
    %cst_47 = arith.constant dense<0.000000e+00> : vector<8x128xf32>
    %87 = vector.multi_reduction <add>, %86, %cst_47 [0] : vector<1x8x128xf32> to vector<8x128xf32>
    %88 = arith.addf %82, %87 : vector<8x128xf32>
    %c0_48 = arith.constant 0 : index
    %c1_49 = arith.constant 1 : index
    %c0_50 = arith.constant 0 : index
    %c0_51 = arith.constant 0 : index
    %89 = vector.load %arg7[%c0_48, %c1_49, %c0_50, %c0_51] : memref<1x6x8x128xf32, #tpu.memory_space<vmem>>, vector<1x1x8x128xf32>
    %90 = vector.shape_cast %89 : vector<1x1x8x128xf32> to vector<8x128xf32>
    %91 = vector.shape_cast %88 : vector<8x128xf32> to vector<1x1x8x128xf32>
    tpu.vector_store %arg7[%c0_48, %c1_49, %c0_50, %c0_51], %91 {strides = array<i32>} : memref<1x6x8x128xf32, #tpu.memory_space<vmem>>, vector<1x1x8x128xf32>,
    %c0_52 = arith.constant 0 : index
    %c2_53 = arith.constant 2 : index
    %c0_54 = arith.constant 0 : index
    %c0_55 = arith.constant 0 : index
    %92 = vector.load %arg7[%c0_52, %c2_53, %c0_54, %c0_55] : memref<1x6x8x128xf32, #tpu.memory_space<vmem>>, vector<1x1x8x128xf32>
    %93 = vector.shape_cast %92 : vector<1x1x8x128xf32> to vector<8x128xf32>
    %cst_56 = arith.constant 0.000000e+00 : f32
    %94 = vector.broadcast %cst_56 : f32 to vector<8x128xf32>
    %95 = arith.select %15, %10, %94 : vector<8x128xi1>, vector<8x128xf32>
    %96 = vector.shape_cast %95 : vector<8x128xf32> to vector<1x8x128xf32>
    %cst_57 = arith.constant dense<0.000000e+00> : vector<8x128xf32>
    %97 = vector.multi_reduction <add>, %96, %cst_57 [0] : vector<1x8x128xf32> to vector<8x128xf32>
    %98 = arith.addf %93, %97 : vector<8x128xf32>
    %c0_58 = arith.constant 0 : index
    %c2_59 = arith.constant 2 : index
    %c0_60 = arith.constant 0 : index
    %c0_61 = arith.constant 0 : index
    %99 = vector.load %arg7[%c0_58, %c2_59, %c0_60, %c0_61] : memref<1x6x8x128xf32, #tpu.memory_space<vmem>>, vector<1x1x8x128xf32>
    %100 = vector.shape_cast %99 : vector<1x1x8x128xf32> to vector<8x128xf32>
    %101 = vector.shape_cast %98 : vector<8x128xf32> to vector<1x1x8x128xf32>
    tpu.vector_store %arg7[%c0_58, %c2_59, %c0_60, %c0_61], %101 {strides = array<i32>} : memref<1x6x8x128xf32, #tpu.memory_space<vmem>>, vector<1x1x8x128xf32>,
    %c0_62 = arith.constant 0 : index
    %c3_63 = arith.constant 3 : index
    %c0_64 = arith.constant 0 : index
    %c0_65 = arith.constant 0 : index
    %102 = vector.load %arg7[%c0_62, %c3_63, %c0_64, %c0_65] : memref<1x6x8x128xf32, #tpu.memory_space<vmem>>, vector<1x1x8x128xf32>
    %103 = vector.shape_cast %102 : vector<1x1x8x128xf32> to vector<8x128xf32>
    %cst_66 = arith.constant 1.000000e+00 : f32
    %cst_67 = arith.constant 0.000000e+00 : f32
    %104 = vector.broadcast %cst_66 : f32 to vector<8x128xf32>
    %105 = vector.broadcast %cst_67 : f32 to vector<8x128xf32>
    %106 = arith.select %15, %104, %105 : vector<8x128xi1>, vector<8x128xf32>
    %107 = vector.shape_cast %106 : vector<8x128xf32> to vector<1x8x128xf32>
    %cst_68 = arith.constant dense<0.000000e+00> : vector<8x128xf32>
    %108 = vector.multi_reduction <add>, %107, %cst_68 [0] : vector<1x8x128xf32> to vector<8x128xf32>
    %109 = arith.addf %103, %108 : vector<8x128xf32>
    %c0_69 = arith.constant 0 : index
    %c3_70 = arith.constant 3 : index
    %c0_71 = arith.constant 0 : index
    %c0_72 = arith.constant 0 : index
    %110 = vector.load %arg7[%c0_69, %c3_70, %c0_71, %c0_72] : memref<1x6x8x128xf32, #tpu.memory_space<vmem>>, vector<1x1x8x128xf32>
    %111 = vector.shape_cast %110 : vector<1x1x8x128xf32> to vector<8x128xf32>
    %112 = vector.shape_cast %109 : vector<8x128xf32> to vector<1x1x8x128xf32>
    tpu.vector_store %arg7[%c0_69, %c3_70, %c0_71, %c0_72], %112 {strides = array<i32>} : memref<1x6x8x128xf32, #tpu.memory_space<vmem>>, vector<1x1x8x128xf32>,
    %c0_73 = arith.constant 0 : index
    %c4 = arith.constant 4 : index
    %c0_74 = arith.constant 0 : index
    %c0_75 = arith.constant 0 : index
    %113 = vector.load %arg7[%c0_73, %c4, %c0_74, %c0_75] : memref<1x6x8x128xf32, #tpu.memory_space<vmem>>, vector<1x1x8x128xf32>
    %114 = vector.shape_cast %113 : vector<1x1x8x128xf32> to vector<8x128xf32>
    %115 = vector.shape_cast %70 : vector<8x128xf32> to vector<1x8x128xf32>
    %cst_76 = arith.constant dense<0.000000e+00> : vector<8x128xf32>
    %116 = vector.multi_reduction <add>, %115, %cst_76 [0] : vector<1x8x128xf32> to vector<8x128xf32>
    %117 = arith.addf %114, %116 : vector<8x128xf32>
    %c0_77 = arith.constant 0 : index
    %c4_78 = arith.constant 4 : index
    %c0_79 = arith.constant 0 : index
    %c0_80 = arith.constant 0 : index
    %118 = vector.load %arg7[%c0_77, %c4_78, %c0_79, %c0_80] : memref<1x6x8x128xf32, #tpu.memory_space<vmem>>, vector<1x1x8x128xf32>
    %119 = vector.shape_cast %118 : vector<1x1x8x128xf32> to vector<8x128xf32>
    %120 = vector.shape_cast %117 : vector<8x128xf32> to vector<1x1x8x128xf32>
    tpu.vector_store %arg7[%c0_77, %c4_78, %c0_79, %c0_80], %120 {strides = array<i32>} : memref<1x6x8x128xf32, #tpu.memory_space<vmem>>, vector<1x1x8x128xf32>,
    %c0_i32_81 = arith.constant 0 : i32
    %121 = arith.cmpi eq, %arg0, %c0_i32_81 : i32
    %122 = arith.andi %2, %121 : i1
    %123 = arith.extui %122 : i1 to i32
    %c0_i32_82 = arith.constant 0 : i32
    %124 = arith.cmpi ne, %123, %c0_i32_82 : i32
    scf.if %124 {
      %125 = tpu.iota {dimensions = array<i32: 1>} : vector<8x128xi32>
      %c0_i32_83 = arith.constant 0 : i32
      %126 = vector.broadcast %c0_i32_83 : i32 to vector<8x128xi32>
      %127 = arith.cmpi eq, %61, %126 : vector<8x128xi32>
      %c4_i32 = arith.constant 4 : i32
      %128 = vector.broadcast %c4_i32 : i32 to vector<8x128xi32>
      %129 = arith.cmpi slt, %125, %128 : vector<8x128xi32>
      %130 = arith.andi %127, %129 : vector<8x128xi1>
      %c0_84 = arith.constant 0 : index
      %c5 = arith.constant 5 : index
      %c0_85 = arith.constant 0 : index
      %c0_86 = arith.constant 0 : index
      %131 = vector.load %arg7[%c0_84, %c5, %c0_85, %c0_86] : memref<1x6x8x128xf32, #tpu.memory_space<vmem>>, vector<1x1x8x128xf32>
      %132 = vector.shape_cast %131 : vector<1x1x8x128xf32> to vector<8x128xf32>
      %cst_87 = arith.constant 0.000000e+00 : f32
      %133 = vector.broadcast %cst_87 : f32 to vector<8x128xf32>
      %134 = arith.select %130, %10, %133 : vector<8x128xi1>, vector<8x128xf32>
      %135 = vector.shape_cast %134 : vector<8x128xf32> to vector<1x8x128xf32>
      %cst_88 = arith.constant dense<0.000000e+00> : vector<8x128xf32>
      %136 = vector.multi_reduction <add>, %135, %cst_88 [0] : vector<1x8x128xf32> to vector<8x128xf32>
      %137 = arith.addf %132, %136 : vector<8x128xf32>
      %c0_89 = arith.constant 0 : index
      %c5_90 = arith.constant 5 : index
      %c0_91 = arith.constant 0 : index
      %c0_92 = arith.constant 0 : index
      %138 = vector.load %arg7[%c0_89, %c5_90, %c0_91, %c0_92] : memref<1x6x8x128xf32, #tpu.memory_space<vmem>>, vector<1x1x8x128xf32>
      %139 = vector.shape_cast %138 : vector<1x1x8x128xf32> to vector<8x128xf32>
      %140 = vector.shape_cast %137 : vector<8x128xf32> to vector<1x1x8x128xf32>
      tpu.vector_store %arg7[%c0_89, %c5_90, %c0_91, %c0_92], %140 {strides = array<i32>} : memref<1x6x8x128xf32, #tpu.memory_space<vmem>>, vector<1x1x8x128xf32>,
    } else {
    }
    return
  }
  func.func @transform_0(%arg0: i32, %arg1: i32, %arg2: i32) -> (i32, i32, i32, i32) {
    %c1_i32 = arith.constant 1 : i32
    %0 = arith.muli %arg0, %c1_i32 : i32
    %1 = arith.addi %0, %arg2 : i32
    %c0_i32 = arith.constant 0 : i32
    %c0_i32_0 = arith.constant 0 : i32
    %c0_i32_1 = arith.constant 0 : i32
    return %arg1, %c0_i32, %1, %c0_i32_0 : i32, i32, i32, i32
  }
  func.func @transform_1(%arg0: i32, %arg1: i32, %arg2: i32) -> (i32, i32, i32) {
    %c1_i32 = arith.constant 1 : i32
    %0 = arith.muli %arg0, %c1_i32 : i32
    %1 = arith.addi %0, %arg2 : i32
    %c0_i32 = arith.constant 0 : i32
    %c0_i32_0 = arith.constant 0 : i32
    return %arg1, %1, %c0_i32 : i32, i32, i32
  }
  func.func @transform_2(%arg0: i32, %arg1: i32, %arg2: i32) -> (i32, i32, i32) {
    %c1_i32 = arith.constant 1 : i32
    %0 = arith.muli %arg0, %c1_i32 : i32
    %1 = arith.addi %0, %arg2 : i32
    %c0_i32 = arith.constant 0 : i32
    %c0_i32_0 = arith.constant 0 : i32
    return %arg1, %1, %c0_i32 : i32, i32, i32
  }
  func.func @transform_3(%arg0: i32, %arg1: i32, %arg2: i32) -> (i32, i32, i32) {
    %c1_i32 = arith.constant 1 : i32
    %0 = arith.muli %arg0, %c1_i32 : i32
    %1 = arith.addi %0, %arg2 : i32
    %c0_i32 = arith.constant 0 : i32
    %c0_i32_0 = arith.constant 0 : i32
    return %arg1, %1, %c0_i32 : i32, i32, i32
  }
  func.func @transform_4(%arg0: i32, %arg1: i32, %arg2: i32) -> (i32, i32, i32, i32) {
    %c0_i32 = arith.constant 0 : i32
    %c0_i32_0 = arith.constant 0 : i32
    %c0_i32_1 = arith.constant 0 : i32
    %c0_i32_2 = arith.constant 0 : i32
    return %arg0, %c0_i32, %c0_i32_0, %c0_i32_1 : i32, i32, i32, i32
  }
}

</mosaic_0001>

<llo_original>
// kernel: tpu_custom_call.1
$region0: #{tpu_custom_call.1}
  #allocation0 [shape = 'u32[]', space=smem, size = 0x4, offset = 0x4, fixed_abs, tag = 'smem constant byte address 0x4 - core index']
  #allocation1 [shape = 'u32[72,128]{1,0:T(1,128)}', space=vmem, size = 0x9000, scoped, tag = 'internal scratch']
  %s0 = inlined_call_operand.hbm [shape: f32[2,4,16,128], index: 0, kind: input, shape index: {}]
  %s1 = inlined_call_operand.hbm [shape: f32[2,16,128], index: 1, kind: input, shape index: {}]
  %s2 = inlined_call_operand.hbm [shape: f32[2,16,128], index: 2, kind: input, shape index: {}]
  %s3 = inlined_call_operand.hbm [shape: f32[2,16,128], index: 3, kind: input, shape index: {}]
  %s4 = inlined_call_operand.hbm [shape: f32[2,6,8,128], index: 4, kind: output, shape index: {}]
  %s5 = sld [smem:[#allocation0]]
  $region73: #{tpu_custom_call.1} parent=0
    _
  %s7 = ssub.s32 1, %s5
  %s8 = scalar_select 0, %s7, %s5
  $region1: #{tpu_custom_call.1} parent=0
    #allocation2 [shape = 'u8[32768]{0}', space=vmem, size = 0x8000, scoped, tag = 'input window, operand 0']
    #allocation3 [shape = 's32[2]{0}', space=sflag, size = 0x8, scoped, tag = 'scoped memory for tpu_custom_call.1']
    #allocation4 [shape = 's32[2]{0}', space=sflag, size = 0x8, scoped, tag = 'scoped memory for tpu_custom_call.1']
    #allocation5 [shape = 'u8[8192]{0}', space=vmem, size = 0x2000, scoped, tag = 'input window, operand 1']
    #allocation6 [shape = 's32[2]{0}', space=sflag, size = 0x8, scoped, tag = 'scoped memory for tpu_custom_call.1']
    #allocation7 [shape = 'u8[8192]{0}', space=vmem, size = 0x2000, scoped, tag = 'input window, operand 2']
    #allocation8 [shape = 'u8[8192]{0}', space=vmem, size = 0x2000, scoped, tag = 'input window, operand 3']
    #allocation9 [shape = 's32[2]{0}', space=sflag, size = 0x8, scoped, tag = 'scoped memory for tpu_custom_call.1']
    #allocation10 [shape = 'u8[49152]{0}', space=vmem, size = 0xc000, scoped, tag = 'output window, operand 0']
    %9 = vsyncpa [#allocation3], 0
    %s10 = scalar_lea.sflag [#allocation3], 1
    %11 = vsyncpa %s10, 0
    %12 = vsyncpa [#allocation6], 0
    %s13 = scalar_lea.sflag [#allocation6], 1
    %14 = vsyncpa %s13, 0
    %15 = vsyncpa [#allocation9], 0
    %s16 = scalar_lea.sflag [#allocation9], 1
    %17 = vsyncpa %s16, 0
    %18 = vsyncpa [#allocation4], 0
    %s19 = scalar_lea.sflag [#allocation4], 1
    %20 = vsyncpa %s19, 0
    loop: start=0, step=1, limit=6
    $region2: #{tpu_custom_call.1} parent=1 // loop_pre_header
      _
    $region3: #{tpu_custom_call.1} parent=1 // loop_header
      %s22 = sphi 0, %s26
      %p23 = scmp.ge.s32.totalorder %s22, 6
      %s29 = sphi 0, %s48
      %s30 = sphi 0, %s44
      %s31 = sphi 0, %s40
      %s32 = sphi 0, %s29
      %s33 = sphi 0, %s30
      %s34 = sphi 0, %s31
      %s35 = sphi 0, %s32
      %s36 = sphi 0, %s33
      %s37 = sphi 0, %s34
      %s55 = sphi 0, %s57
      %s58 = sphi 0, %s55
      %s59 = sphi 0, %s58
      %s75 = sphi 0, %s59
      %s85 = sphi 0, %s87
      %s88 = sphi 0, %s85
      %s89 = sphi 0, %s88
      %s105 = sphi 0, %s89
      %s115 = sphi 0, %s117
      %s118 = sphi 0, %s115
      %s119 = sphi 0, %s118
      %s135 = sphi 0, %s119
      %s145 = sphi 0, %s147
      %s148 = sphi 0, %s145
      %s149 = sphi 0, %s148
      %s165 = sphi 0, %s149
      %s171 = sphi 0, %s173
      %s174 = sphi 0, %s171
      %s175 = sphi 0, %s174
      %s191 = sphi 0, %s175
    $region4: #{tpu_custom_call.1} parent=1 // loop_header_branch
      %25 = sbr.rel (%p23) target = $region8
    $region5: #{tpu_custom_call.1} parent=1 // loop_body
      %s27 = ssub.s32 %s22, 1
      %s28 = ssub.s32 %s22, 2
      %s38 = sadd.s32 1, %s31
      %p39 = scmp.ge.s32.totalorder %s38, 1
      %s40 = scalar_select %p39, 0, %s38
      %s41 = sadd.s32 1, %s30
      %s42 = scalar_select %p39, %s41, %s30
      %p43 = scmp.ge.s32.totalorder %s42, 2
      %s44 = scalar_select %p43, 0, %s42
      %s45 = sadd.s32 1, %s29
      %s46 = scalar_select %p43, %s45, %s29
      %p47 = scmp.ge.s32.totalorder %s46, 2
      %s48 = scalar_select %p47, 0, %s46
      %s49 = sadd.s32 %s29, %s31
      %s50 = sadd.s32 %s48, %s40
      %s51 = ssub.s32 %s30, %s44
      %s52 = ssub.s32 %s49, %s50
      %s53 = sor.u32 %s51, %s52
      %p54 = scmp.eq.s32.totalorder %s53, 0
      %s56 = sadd.s32 %s55, 1
      %s57 = scalar_select %p54, %s55, %s56
      %p60 = pneg %p54
      %p61 = scmp.eq.s32.totalorder %s22, 3
      %p62 = por %p60, %p61
      %p63 = scmp.ne.s32.totalorder %s55, %s58
      %p64 = scmp.eq.s32.totalorder %s22, 0
      %p65 = por %p63, %p64
      %p66 = scmp.ne.s32.totalorder %s55, %s58
      %p67 = scmp.eq.s32.totalorder %s27, 3
      %p68 = por %p66, %p67
      %p69 = scmp.ne.s32.totalorder %s58, %s59
      %p70 = scmp.eq.s32.totalorder %s27, 0
      %p71 = por %p69, %p70
      %p72 = scmp.ne.s32.totalorder %s58, %s59
      %p73 = scmp.eq.s32.totalorder %s28, 3
      %p74 = por %p72, %p73
      %p76 = scmp.ne.s32.totalorder %s59, %s75
      %p77 = scmp.eq.s32.totalorder %s28, 0
      %p78 = por %p76, %p77
      %s79 = sadd.s32 %s29, %s31
      %s80 = sadd.s32 %s48, %s40
      %s81 = ssub.s32 %s30, %s44
      %s82 = ssub.s32 %s79, %s80
      %s83 = sor.u32 %s81, %s82
      %p84 = scmp.eq.s32.totalorder %s83, 0
      %s86 = sadd.s32 %s85, 1
      %s87 = scalar_select %p84, %s85, %s86
      %p90 = pneg %p84
      %p91 = scmp.eq.s32.totalorder %s22, 3
      %p92 = por %p90, %p91
      %p93 = scmp.ne.s32.totalorder %s85, %s88
      %p94 = scmp.eq.s32.totalorder %s22, 0
      %p95 = por %p93, %p94
      %p96 = scmp.ne.s32.totalorder %s85, %s88
      %p97 = scmp.eq.s32.totalorder %s27, 3
      %p98 = por %p96, %p97
      %p99 = scmp.ne.s32.totalorder %s88, %s89
      %p100 = scmp.eq.s32.totalorder %s27, 0
      %p101 = por %p99, %p100
      %p102 = scmp.ne.s32.totalorder %s88, %s89
      %p103 = scmp.eq.s32.totalorder %s28, 3
      %p104 = por %p102, %p103
      %p106 = scmp.ne.s32.totalorder %s89, %s105
      %p107 = scmp.eq.s32.totalorder %s28, 0
      %p108 = por %p106, %p107
      %s109 = sadd.s32 %s29, %s31
      %s110 = sadd.s32 %s48, %s40
      %s111 = ssub.s32 %s30, %s44
      %s112 = ssub.s32 %s109, %s110
      %s113 = sor.u32 %s111, %s112
      %p114 = scmp.eq.s32.totalorder %s113, 0
      %s116 = sadd.s32 %s115, 1
      %s117 = scalar_select %p114, %s115, %s116
      %p120 = pneg %p114
      %p121 = scmp.eq.s32.totalorder %s22, 3
      %p122 = por %p120, %p121
      %p123 = scmp.ne.s32.totalorder %s115, %s118
      %p124 = scmp.eq.s32.totalorder %s22, 0
      %p125 = por %p123, %p124
      %p126 = scmp.ne.s32.totalorder %s115, %s118
      %p127 = scmp.eq.s32.totalorder %s27, 3
      %p128 = por %p126, %p127
      %p129 = scmp.ne.s32.totalorder %s118, %s119
      %p130 = scmp.eq.s32.totalorder %s27, 0
      %p131 = por %p129, %p130
      %p132 = scmp.ne.s32.totalorder %s118, %s119
      %p133 = scmp.eq.s32.totalorder %s28, 3
      %p134 = por %p132, %p133
      %p136 = scmp.ne.s32.totalorder %s119, %s135
      %p137 = scmp.eq.s32.totalorder %s28, 0
      %p138 = por %p136, %p137
      %s139 = sadd.s32 %s29, %s31
      %s140 = sadd.s32 %s48, %s40
      %s141 = ssub.s32 %s30, %s44
      %s142 = ssub.s32 %s139, %s140
      %s143 = sor.u32 %s141, %s142
      %p144 = scmp.eq.s32.totalorder %s143, 0
      %s146 = sadd.s32 %s145, 1
      %s147 = scalar_select %p144, %s145, %s146
      %p150 = pneg %p144
      %p151 = scmp.eq.s32.totalorder %s22, 3
      %p152 = por %p150, %p151
      %p153 = scmp.ne.s32.totalorder %s145, %s148
      %p154 = scmp.eq.s32.totalorder %s22, 0
      %p155 = por %p153, %p154
      %p156 = scmp.ne.s32.totalorder %s145, %s148
      %p157 = scmp.eq.s32.totalorder %s27, 3
      %p158 = por %p156, %p157
      %p159 = scmp.ne.s32.totalorder %s148, %s149
      %p160 = scmp.eq.s32.totalorder %s27, 0
      %p161 = por %p159, %p160
      %p162 = scmp.ne.s32.totalorder %s148, %s149
      %p163 = scmp.eq.s32.totalorder %s28, 3
      %p164 = por %p162, %p163
      %p166 = scmp.ne.s32.totalorder %s149, %s165
      %p167 = scmp.eq.s32.totalorder %s28, 0
      %p168 = por %p166, %p167
      %s169 = ssub.s32 %s29, %s48
      %p170 = scmp.eq.s32.totalorder %s169, 0
      %s172 = sadd.s32 %s171, 1
      %s173 = scalar_select %p170, %s171, %s172
      %p176 = pneg %p170
      %p177 = scmp.eq.s32.totalorder %s22, 3
      %p178 = por %p176, %p177
      %p179 = scmp.ne.s32.totalorder %s171, %s174
      %p180 = scmp.eq.s32.totalorder %s22, 0
      %p181 = por %p179, %p180
      %p182 = scmp.ne.s32.totalorder %s171, %s174
      %p183 = scmp.eq.s32.totalorder %s27, 3
      %p184 = por %p182, %p183
      %p185 = scmp.ne.s32.totalorder %s174, %s175
      %p186 = scmp.eq.s32.totalorder %s27, 0
      %p187 = por %p185, %p186
      %p188 = scmp.ne.s32.totalorder %s174, %s175
      %p189 = scmp.eq.s32.totalorder %s28, 3
      %p190 = por %p188, %p189
      %p192 = scmp.ne.s32.totalorder %s175, %s191
      %p193 = scmp.eq.s32.totalorder %s28, 0
      %p194 = por %p192, %p193
      %p195 = scmp.le.s32.totalorder 1, %s22
      %p196 = scmp.lt.s32.totalorder %s22, 5
      %p197 = pnand %p195, %p196
      %p198 = pneg %p197
      // Predicated region
      $region9: #{tpu_custom_call.1} parent=5 // pred_check
        _
      $region10: #{tpu_custom_call.1} parent=5 // pred_check_branch
        %200 = sbr.rel (%p197) target = $region12
      $region11: #{tpu_custom_call.1} parent=5 // pred_region
        %s201 = ssub.s32 %s22, 1
      $region12: #{tpu_custom_call.1} parent=5 // pred_fallthru
        _
      %p202 = scmp.lt.s32.totalorder %s22, 4
      // Predicated region
      $region13: #{tpu_custom_call.1} parent=5 // pred_check
        %p203 = pneg %p202
      $region14: #{tpu_custom_call.1} parent=5 // pred_check_branch
        %205 = sbr.rel (%p203) target = $region16
      $region15: #{tpu_custom_call.1} parent=5 // pred_region
        // Predicated region
        $region17: #{tpu_custom_call.1} parent=15 // pred_check
          %p206 = pneg %p65
        $region18: #{tpu_custom_call.1} parent=15 // pred_check_branch
          %208 = sbr.rel (%p206) target = $region20
        $region19: #{tpu_custom_call.1} parent=15 // pred_region
          %s209 = sand.u32 %s55, 1
          %s210 = scalar_lea.sflag [#allocation3], %s209
          %s211 = sand.u32 %s55, 1
          %s212 = smul.addr %s211, 32
          %s213 = scalar_lea.vmem [#allocation2], %s212
          %s214 = sadd.s32 %s29, %s31
          %216 = vsyncadd %s210, 0
          %s217 = smul.addr %s30, 8
          %s218 = sadd.s32 %s214, %s217
          %s219 = smul.addr %s218, 8
          %s220 = scalar_lea.hbm %s0, %s219
          %s221 = sshll.u32 %s220, 4
          %s222 = int_to_ptr.hbm [resolvable:$true] %s221
          %s223 = sshll.u32 %s213, 4
          %s224 = int_to_ptr.vmem [resolvable:$true] %s223
          %229 = dma.hbm_to_vmem [thread:$0]  %s222, 512, %s224, %s210, 256, 128, 8
        $region20: #{tpu_custom_call.1} parent=15 // pred_fallthru
          _
        // Predicated region
        $region21: #{tpu_custom_call.1} parent=15 // pred_check
          %p230 = pneg %p95
        $region22: #{tpu_custom_call.1} parent=15 // pred_check_branch
          %232 = sbr.rel (%p230) target = $region24
        $region23: #{tpu_custom_call.1} parent=15 // pred_region
          %s233 = sand.u32 %s22, 1
          %s234 = scalar_lea.sflag [#allocation6], %s233
          %s235 = sand.u32 %s85, 1
          %s236 = smul.addr %s235, 8
          %s237 = scalar_lea.vmem [#allocation5], %s236
          %s238 = sadd.s32 %s29, %s31
          %240 = vsyncadd %s234, 0
          %s241 = smul.addr %s30, 2
          %s242 = sadd.s32 %s238, %s241
          %s243 = smul.addr %s242, 8
          %s244 = scalar_lea.hbm %s1, %s243
          %s246 = sshll.u32 %s244, 4
          %s247 = int_to_ptr.hbm [resolvable:$true] %s246
          %s248 = sshll.u32 %s237, 4
          %s249 = int_to_ptr.vmem [resolvable:$true] %s248
          %251 = dma.hbm_to_vmem [thread:$0]  %s247, 128, %s249, %s234
        $region24: #{tpu_custom_call.1} parent=15 // pred_fallthru
          _
        // Predicated region
        $region25: #{tpu_custom_call.1} parent=15 // pred_check
          %p252 = pneg %p125
        $region26: #{tpu_custom_call.1} parent=15 // pred_check_branch
          %254 = sbr.rel (%p252) target = $region28
        $region27: #{tpu_custom_call.1} parent=15 // pred_region
          %s255 = sand.u32 %s22, 1
          %s256 = scalar_lea.sflag [#allocation6], %s255
          %s257 = sand.u32 %s115, 1
          %s258 = smul.addr %s257, 8
          %s259 = scalar_lea.vmem [#allocation7], %s258
          %s260 = sadd.s32 %s29, %s31
          %262 = vsyncadd %s256, 0
          %s263 = smul.addr %s30, 2
          %s264 = sadd.s32 %s260, %s263
          %s265 = smul.addr %s264, 8
          %s266 = scalar_lea.hbm %s2, %s265
          %s268 = sshll.u32 %s266, 4
          %s269 = int_to_ptr.hbm [resolvable:$true] %s268
          %s270 = sshll.u32 %s259, 4
          %s271 = int_to_ptr.vmem [resolvable:$true] %s270
          %273 = dma.hbm_to_vmem [thread:$0]  %s269, 128, %s271, %s256
        $region28: #{tpu_custom_call.1} parent=15 // pred_fallthru
          _
        // Predicated region
        $region29: #{tpu_custom_call.1} parent=15 // pred_check
          %p274 = pneg %p155
        $region30: #{tpu_custom_call.1} parent=15 // pred_check_branch
          %276 = sbr.rel (%p274) target = $region32
        $region31: #{tpu_custom_call.1} parent=15 // pred_region
          %s277 = sand.u32 %s145, 1
          %s278 = scalar_lea.sflag [#allocation9], %s277
          %s279 = sand.u32 %s145, 1
          %s280 = smul.addr %s279, 8
          %s281 = scalar_lea.vmem [#allocation8], %s280
          %s282 = sadd.s32 %s29, %s31
          %284 = vsyncadd %s278, 0
          %s285 = smul.addr %s30, 2
          %s286 = sadd.s32 %s282, %s285
          %s287 = smul.addr %s286, 8
          %s288 = scalar_lea.hbm %s3, %s287
          %s290 = sshll.u32 %s288, 4
          %s291 = int_to_ptr.hbm [resolvable:$true] %s290
          %s292 = sshll.u32 %s281, 4
          %s293 = int_to_ptr.vmem [resolvable:$true] %s292
          %295 = dma.hbm_to_vmem [thread:$0]  %s291, 128, %s293, %s278
        $region32: #{tpu_custom_call.1} parent=15 // pred_fallthru
          _
      $region16: #{tpu_custom_call.1} parent=5 // pred_fallthru
        _
      %p296 = scmp.le.s32.totalorder 1, %s22
      %p297 = scmp.lt.s32.totalorder %s22, 5
      %p298 = pnand %p296, %p297
      %p299 = pneg %p298
      // Predicated region
      $region33: #{tpu_custom_call.1} parent=5 // pred_check
        _
      $region34: #{tpu_custom_call.1} parent=5 // pred_check_branch
        %301 = sbr.rel (%p298) target = $region36
      $region35: #{tpu_custom_call.1} parent=5 // pred_region
        %s302 = ssub.s32 %s22, 1
        %s303 = sand.u32 %s58, 1
        %s304 = scalar_lea.sflag [#allocation3], %s303
        %s305 = sand.u32 %s58, 1
        %s306 = smul.addr %s305, 32
        %s307 = scalar_lea.vmem [#allocation2], %s306
        // Predicated region
        $region37: #{tpu_custom_call.1} parent=35 // pred_check
          %p308 = pneg %p71
        $region38: #{tpu_custom_call.1} parent=35 // pred_check_branch
          %310 = sbr.rel (%p308) target = $region40
        $region39: #{tpu_custom_call.1} parent=35 // pred_region
          %312 = dma.done %s304, 512
        $region40: #{tpu_custom_call.1} parent=35 // pred_fallthru
          _
        %s313 = sand.u32 %s27, 1
        %s314 = scalar_lea.sflag [#allocation6], %s313
        %s315 = sand.u32 %s88, 1
        %s316 = smul.addr %s315, 8
        %s317 = scalar_lea.vmem [#allocation5], %s316
        // Predicated region
        $region41: #{tpu_custom_call.1} parent=35 // pred_check
          %p318 = pneg %p101
        $region42: #{tpu_custom_call.1} parent=35 // pred_check_branch
          %320 = sbr.rel (%p318) target = $region44
        $region43: #{tpu_custom_call.1} parent=35 // pred_region
          %322 = dma.done %s314, 128
        $region44: #{tpu_custom_call.1} parent=35 // pred_fallthru
          _
        %s323 = sand.u32 %s27, 1
        %s324 = scalar_lea.sflag [#allocation6], %s323
        %s325 = sand.u32 %s118, 1
        %s326 = smul.addr %s325, 8
        %s327 = scalar_lea.vmem [#allocation7], %s326
        // Predicated region
        $region45: #{tpu_custom_call.1} parent=35 // pred_check
          %p328 = pneg %p131
        $region46: #{tpu_custom_call.1} parent=35 // pred_check_branch
          %330 = sbr.rel (%p328) target = $region48
        $region47: #{tpu_custom_call.1} parent=35 // pred_region
          %332 = dma.done %s324, 128
        $region48: #{tpu_custom_call.1} parent=35 // pred_fallthru
          _
        %s333 = sand.u32 %s148, 1
        %s334 = scalar_lea.sflag [#allocation9], %s333
        %s335 = sand.u32 %s148, 1
        %s336 = smul.addr %s335, 8
        %s337 = scalar_lea.vmem [#allocation8], %s336
        // Predicated region
        $region49: #{tpu_custom_call.1} parent=35 // pred_check
          %p338 = pneg %p161
        $region50: #{tpu_custom_call.1} parent=35 // pred_check_branch
          %340 = sbr.rel (%p338) target = $region52
        $region51: #{tpu_custom_call.1} parent=35 // pred_region
          %342 = dma.done %s334, 128
        $region52: #{tpu_custom_call.1} parent=35 // pred_fallthru
          _
        %s343 = sand.u32 %s58, 1
        %s344 = scalar_lea.sflag [#allocation3], %s343
        %s345 = sand.u32 %s58, 1
        %s346 = smul.addr %s345, 32
        %s347 = scalar_lea.vmem [#allocation2], %s346
        %p348 = pneg %p71
        %p349 = pneg %p68
        %s350 = sand.u32 %s27, 1
        %s351 = scalar_lea.sflag [#allocation6], %s350
        %s352 = sand.u32 %s88, 1
        %s353 = smul.addr %s352, 8
        %s354 = scalar_lea.vmem [#allocation5], %s353
        %p355 = pneg %p101
        %p356 = pneg %p98
        %s357 = sand.u32 %s27, 1
        %s358 = scalar_lea.sflag [#allocation6], %s357
        %s359 = sand.u32 %s118, 1
        %s360 = smul.addr %s359, 8
        %s361 = scalar_lea.vmem [#allocation7], %s360
        %p362 = pneg %p131
        %p363 = pneg %p128
        %s364 = sand.u32 %s148, 1
        %s365 = scalar_lea.sflag [#allocation9], %s364
        %s366 = sand.u32 %s148, 1
        %s367 = smul.addr %s366, 8
        %s368 = scalar_lea.vmem [#allocation8], %s367
        %p369 = pneg %p161
        %p370 = pneg %p158
        %p371 = pneg %p187
        %p372 = pneg %p184
        %s373 = sand.u32 %s174, 1
        %s374 = scalar_lea.sflag [#allocation4], %s373
        %s375 = sand.u32 %s174, 1
        %s376 = smul.addr %s375, 48
        %s377 = scalar_lea.vmem [#allocation10], %s376
        %s378 = sadd.s32 %s32, %s34
        %s379 = sadd.s32 %s32, %s34
        %s380 = sadd.s32 %s32, %s34
        %s381 = sadd.s32 %s32, %s34
        %p382 = scmp.eq.s32.totalorder %s33, 0
        %p383 = scmp.eq.s32.totalorder %s34, 0
        %p384 = pnand %p382, %p383
        %p385 = pneg %p384
        // Predicated region
        $region53: #{tpu_custom_call.1} parent=35 // pred_check
          _
        $region54: #{tpu_custom_call.1} parent=35 // pred_check_branch
          %387 = sbr.rel (%p384) target = $region56
        $region55: #{tpu_custom_call.1} parent=35 // pred_region
          %388 = vst [vmem:[%s377] sm:$0xff] 0.0
          %389 = vst [vmem:[%s377 + $0x8] sm:$0xff] 0.0
          %390 = vst [vmem:[%s377 + $0x10] sm:$0xff] 0.0
          %391 = vst [vmem:[%s377 + $0x18] sm:$0xff] 0.0
          %392 = vst [vmem:[%s377 + $0x20] sm:$0xff] 0.0
          %393 = vst [vmem:[%s377 + $0x28] sm:$0xff] 0.0
        $region56: #{tpu_custom_call.1} parent=35 // pred_fallthru
          _
        %v394 = vld [vmem:[%s327] sm:$0xff]
        %v395 = vld [vmem:[%s337] sm:$0xff]
        %v396 = vsub.f32 %v394, %v395
        %v397 = vmul.f32 %v396, %v396
        %v398 = vld [vmem:[%s317] sm:$0xff]
        %v399 = vcvt.f32.s32.to.zero.pseudo %v398
        %vm400 = vcmp.gt.f32.partialorder %v398, 0.5
        %v401 = vld [vmem:[%s307] sm:$0xff]
        %s402 = scalar_lea.vmem %s307, 8 [#allocation2]
        %v403 = vld [vmem:[%s402] sm:$0xff]
        %s404 = scalar_lea.vmem %s307, 16 [#allocation2]
        %v405 = vld [vmem:[%s404] sm:$0xff]
        %s406 = scalar_lea.vmem %s307, 24 [#allocation2]
        %v407 = vld [vmem:[%s406] sm:$0xff]
        %v408 = vmax.f32 %v403, %v405
        %v409 = vmax.f32 %v408, %v407
        %vm410 = vcmp.gt.f32.partialorder %v409, %v401
        %v411 = vmax.f32 %v401, %v409
        %v412 = vsub.f32 %v401, %v411
        %v413 = vmul.f32 %v412, 1.442695
        %v414 = vpow.pop %v413
        %vm415 = vcmp.eq.s32.totalorder %v399, 0
        %v416 = vsel %vm415, %v401, 0.0
        %v417 = vsub.f32 %v403, %v411
        %v418 = vmul.f32 %v417, 1.442695
        %v419 = vpow.pop %v418
        %v420 = vadd.f32 %v414, %v419
        %vm421 = vcmp.eq.s32.totalorder %v399, 1
        %v422 = vsel %vm421, %v403, 0.0
        %v423 = vadd.f32 %v416, %v422
        %v424 = vsub.f32 %v405, %v411
        %v425 = vmul.f32 %v424, 1.442695
        %v426 = vpow.pop %v425
        %v427 = vadd.f32 %v420, %v426
        %vm428 = vcmp.eq.s32.totalorder %v399, 2
        %v429 = vsel %vm428, %v405, 0.0
        %v430 = vadd.f32 %v423, %v429
        %v431 = vsub.f32 %v407, %v411
        %v432 = vmul.f32 %v431, 1.442695
        %v433 = vpow.pop %v432
        %v434 = vadd.f32 %v427, %v433
        %vm435 = vcmp.eq.s32.totalorder %v399, 3
        %v436 = vsel %vm435, %v407, 0.0
        %v437 = vadd.f32 %v430, %v436
        %v438 = vlog2.pop %v434
        %v439 = vmul.f32 %v438, 0.6931472
        %v440 = vadd.f32 %v411, %v439
        %v441 = vsub.f32 %v440, %v437
        %v442 = vlaneseq
        %v443 = vshrl.u32 %v442, 7
        %s444 = sadd.s32 %s32, %s34
        %s445 = smul.u32 %s444, 8
        %v446 = vstv %s445
        %v447 = vadd.s32 %v446, %v443
        %vm448 = vcmp.lt.s32.totalorder %v447, 1
        %v449 = vsel %vm448, %v441, 0.0
        %v450 = vld [vmem:[%s377] sm:$0xff]
        %v451 = vsel %vm410, %v397, 0.0
        %v452 = vadd.f32 %v451, 0.0
        %v453 = vadd.f32 %v450, %v452
        %454 = vst [vmem:[%s377] sm:$0xff] %v453
        %s455 = scalar_lea.vmem %s377, 8 [#allocation10]
        %v456 = vld [vmem:[%s455] sm:$0xff]
        %v457 = vsel %vm410, 1.0, 0.0
        %v458 = vadd.f32 %v457, 0.0
        %v459 = vadd.f32 %v456, %v458
        %460 = vst [vmem:[%s455] sm:$0xff] %v459
        %s461 = scalar_lea.vmem %s377, 16 [#allocation10]
        %v462 = vld [vmem:[%s461] sm:$0xff]
        %v463 = vsel %vm400, %v397, 0.0
        %v464 = vadd.f32 %v463, 0.0
        %v465 = vadd.f32 %v462, %v464
        %466 = vst [vmem:[%s461] sm:$0xff] %v465
        %s467 = scalar_lea.vmem %s377, 24 [#allocation10]
        %v468 = vld [vmem:[%s467] sm:$0xff]
        %v469 = vsel %vm400, 1.0, 0.0
        %v470 = vadd.f32 %v469, 0.0
        %v471 = vadd.f32 %v468, %v470
        %472 = vst [vmem:[%s467] sm:$0xff] %v471
        %s473 = scalar_lea.vmem %s377, 32 [#allocation10]
        %v474 = vld [vmem:[%s473] sm:$0xff]
        %v475 = vadd.f32 %v449, 0.0
        %v476 = vadd.f32 %v474, %v475
        %477 = vst [vmem:[%s473] sm:$0xff] %v476
        %p478 = scmp.eq.s32.totalorder %s32, 0
        %p479 = pnand %p385, %p478
        %p480 = pneg %p479
        // Predicated region
        $region57: #{tpu_custom_call.1} parent=35 // pred_check
          _
        $region58: #{tpu_custom_call.1} parent=35 // pred_check_branch
          %482 = sbr.rel (%p479) target = $region60
        $region59: #{tpu_custom_call.1} parent=35 // pred_region
          %v483 = vlaneseq
          %v484 = vand.u32 %v483, 127
          %vm485 = vcmp.eq.s32.totalorder %v443, 0
          %vm486 = vcmp.lt.s32.totalorder %v484, 4
          %vm487 = vmand %vm485, %vm486
          %s488 = scalar_lea.vmem %s377, 40 [#allocation10]
          %v489 = vld [vmem:[%s488] sm:$0xff]
          %v490 = vsel %vm487, %v397, 0.0
          %v491 = vadd.f32 %v490, 0.0
          %v492 = vadd.f32 %v489, %v491
          %493 = vst [vmem:[%s488] sm:$0xff] %v492
        $region60: #{tpu_custom_call.1} parent=35 // pred_fallthru
          _
        %s494 = sand.u32 %s174, 1
        %s495 = scalar_lea.sflag [#allocation4], %s494
        %s496 = sand.u32 %s174, 1
        %s497 = smul.addr %s496, 48
        %s498 = scalar_lea.vmem [#allocation10], %s497
        // Predicated region
        $region61: #{tpu_custom_call.1} parent=35 // pred_check
          %p499 = pneg %p184
        $region62: #{tpu_custom_call.1} parent=35 // pred_check_branch
          %501 = sbr.rel (%p499) target = $region64
        $region63: #{tpu_custom_call.1} parent=35 // pred_region
          %503 = vsyncadd %s495, 0
          %s504 = smul.addr %s32, 6
          %s505 = smul.addr %s504, 8
          %s506 = scalar_lea.hbm %s4, %s505
          %s507 = sshll.u32 %s498, 4
          %s508 = int_to_ptr.vmem [resolvable:$true] %s507
          %s509 = sshll.u32 %s506, 4
          %s510 = int_to_ptr.hbm [resolvable:$true] %s509
          %515 = dma.vmem_to_hbm [thread:$0]  %s508, 768, %s510, %s495, 128, 128, 8
        $region64: #{tpu_custom_call.1} parent=35 // pred_fallthru
          _
      $region36: #{tpu_custom_call.1} parent=5 // pred_fallthru
        _
      %p516 = scmp.le.s32.totalorder 2, %s22
      // Predicated region
      $region65: #{tpu_custom_call.1} parent=5 // pred_check
        %p517 = pneg %p516
      $region66: #{tpu_custom_call.1} parent=5 // pred_check_branch
        %519 = sbr.rel (%p517) target = $region68
      $region67: #{tpu_custom_call.1} parent=5 // pred_region
        %s520 = ssub.s32 %s22, 2
        // Predicated region
        $region69: #{tpu_custom_call.1} parent=67 // pred_check
          %p521 = pneg %p190
        $region70: #{tpu_custom_call.1} parent=67 // pred_check_branch
          %523 = sbr.rel (%p521) target = $region72
        $region71: #{tpu_custom_call.1} parent=67 // pred_region
          %s524 = sand.u32 %s175, 1
          %s525 = scalar_lea.sflag [#allocation4], %s524
          %s526 = sand.u32 %s175, 1
          %s527 = smul.addr %s526, 48
          %s528 = scalar_lea.vmem [#allocation10], %s527
          %530 = dma.done %s525, 768
        $region72: #{tpu_custom_call.1} parent=67 // pred_fallthru
          _
      $region68: #{tpu_custom_call.1} parent=5 // pred_fallthru
        _
    $region6: #{tpu_custom_call.1} parent=1 // loop_footer
      %s26 = sadd.s32 1, %s22
    $region7: #{tpu_custom_call.1} parent=1 // loop_footer_branch
      %21 = sbr.rel target = $region3
    $region8: #{tpu_custom_call.1} parent=1 // loop_exit
      _
    %531 = vsyncpa [#allocation3], 1
    %s532 = scalar_lea.sflag [#allocation3], 1
    %533 = vsyncpa %s532, 1
    %534 = vsyncpa [#allocation6], 1
    %s535 = scalar_lea.sflag [#allocation6], 1
    %536 = vsyncpa %s535, 1
    %537 = vsyncpa [#allocation9], 1
    %s538 = scalar_lea.sflag [#allocation9], 1
    %539 = vsyncpa %s538, 1
    %540 = vsyncpa [#allocation4], 1
    %s541 = scalar_lea.sflag [#allocation4], 1
    %542 = vsyncpa %s541, 1

</llo_original>
